<compile_context>
chip_gen: v6e
topology: v6e:2x2x1
jax: 0.10.0
libtpu: 0.0.40
codegen_flags: <defaults>
</compile_context>

<pallas_src>
import functools

import numpy as np
import jax
import jax.numpy as jnp
from jax.experimental import pallas as pl
from jax.experimental.pallas import tpu as pltpu


def _round_up(a, b):
    return ((a + b - 1) // b) * b


def _freq_bands(n_freqs, max_freq_log2, min_freq_log2=0.0, log_sampling=True):
    if n_freqs <= 0:
        return np.zeros((0,), dtype=np.float32)
    if log_sampling:
        bands = 2.0 ** np.linspace(min_freq_log2, max_freq_log2, n_freqs)
    else:
        bands = np.linspace(2.0 ** min_freq_log2, 2.0 ** max_freq_log2, n_freqs)
    return bands.astype(np.float32)


def _sinusoidal_kernel(x_ref, o_ref, *, freqs, include_input):
    """Lane-dense elementwise hot path.

    x_ref: (tr, tn) VMEM tile (tn multiple of 128, or the full lane extent).
    o_ref: (n_rows, tr, tn) VMEM tile; each feature row gets one full-width
           unmasked store (no lane concatenate, no masked stores).
    """
    x = x_ref[...].astype(jnp.float32)   # f32 compute: safe on v5e (no bf16 EUP)
    row = 0
    if include_input:
        o_ref[0] = x_ref[...].astype(o_ref.dtype)
        row = 1
    for k, f in enumerate(freqs):
        a = x * float(f)
        # torch computes sin(a) and sin(a + pi/2); the latter == cos(a).
        o_ref[row + 2 * k] = jnp.sin(a).astype(o_ref.dtype)
        o_ref[row + 2 * k + 1] = jnp.cos(a).astype(o_ref.dtype)


def sinusoidal_embed(x, *, n_freqs, max_freq_log2, min_freq_log2=0.0,
                     log_sampling=True, include_input=True,
                     out_dtype=None, feature_major=False,
                     block_rows=64, block_cols=1024):
    """Pallas wrapper reproducing SinusoidalEmbedder.forward.

    x: [..., input_dim]
    Default (feature_major=False): returns [..., out_features] with
      out_features = input_dim * ((1 if include_input else 0) + 2 * N_freqs),
      ordered exactly like torch: [x, sin(f0*x), cos(f0*x), sin(f1*x), ...].
    feature_major=True: returns [n_rows, ..., input_dim] (row order
      x, sin(f0*x), cos(f0*x), ...) with no extra HBM permutation pass; the
      consumer can fold the row interleave into e.g. its Linear weight.
    out_dtype: dtype of the stored features (default: x.dtype). Math stays f32.
    block_rows/block_cols: tile-size hints; keep in the 64-128 x 512-1024
      range -- larger adds VMEM pressure with no bandwidth gain.
    """
    *lead, D = x.shape
    lead = tuple(lead)
    freqs = _freq_bands(n_freqs, max_freq_log2, min_freq_log2, log_sampling)
    F = int(freqs.shape[0])
    n_rows = (1 if include_input else 0) + 2 * F
    out_features = n_rows * D
    out_dtype = x.dtype if out_dtype is None else jnp.dtype(out_dtype)

    M = int(np.prod(lead)) if lead else 1
    if n_rows == 0 or M == 0:
        if feature_major:
            return jnp.zeros((n_rows,) + lead + (D,), dtype=out_dtype)
        return jnp.zeros((*lead, out_features), dtype=out_dtype)

    N = M * D

    # ---- lane-dense 2-D tiling of the flat element stream ------------------
    LANE, SUB = 128, 8
    itemsize_in = jnp.dtype(x.dtype).itemsize
    itemsize_out = jnp.dtype(out_dtype).itemsize

    block_cols = max(LANE, (block_cols // LANE) * LANE)
    # Prefer a tn that divides N exactly -> no input pad, no output slice.
    tn = 0
    for cand in range(block_cols, 0, -LANE):
        if N % cand == 0:
            tn = cand
            break
    if tn == 0:
        tn = min(block_cols, _round_up(N, LANE))

    R = -(-N // tn)                                        # slab rows (ceil)
    tr_cap = max(SUB, (block_rows // SUB) * SUB)
    tr = R if R <= tr_cap else tr_cap

    # Shrink tr until double-buffered in+out blocks fit a conservative budget
    # (safe under v5e's 16 MiB scoped default and v7x's 64 MiB physical VMEM).
    per_row_bytes = tn * (itemsize_in + n_rows * itemsize_out)
    budget = 12 << 20
    while tr > SUB and 2 * per_row_bytes * tr > budget:
        tr = max(SUB, ((tr // 2) // SUB) * SUB)

    # v7x has 2 TensorCores: ensure the parallel grid has >= 2 steps when the
    # slab is big enough to split (no effect on v5e/v6e correctness or perf).
    if R >= 2 * SUB and -(-R // tr) < 2:
        tr = max(SUB, _round_up(-(-R // 2), SUB))

    if tr != R:
        tr = max(SUB, (tr // SUB) * SUB)                   # (8,128) rule
    Rpad = _round_up(R, tr)
    Npad = Rpad * tn

    x_flat = x.reshape(N)
    if Npad != N:
        x_flat = jnp.pad(x_flat, (0, Npad - N))            # zero tail, sliced off
    x2 = x_flat.reshape(Rpad, tn)

    kernel = functools.partial(
        _sinusoidal_kernel,
        freqs=[float(f) for f in freqs],
        include_input=include_input)

    # VMEM budget: double-buffered input + output blocks plus headroom for
    # Mosaic's internal scratch; clamp to 75% of the device's physical VMEM.
    in_block_bytes = tr * tn * itemsize_in
    out_block_bytes = n_rows * tr * tn * itemsize_out
    vmem_need = 2 * (in_block_bytes + out_block_bytes) + (4 << 20)
    try:
        phys_vmem = int(pltpu.get_tpu_info().vmem_capacity_bytes)
    except Exception:
        phys_vmem = 64 << 20                               # v7x per-TC minimum
    vmem_limit = int(min(max(vmem_need, 16 << 20), (phys_vmem * 3) // 4))

    cost = pl.CostEstimate(
        flops=int(F * Npad),
        transcendentals=int(2 * F * Npad),
        bytes_accessed=int(Npad * itemsize_in + n_rows * Npad * itemsize_out))

    out = pl.pallas_call(
        kernel,
        out_shape=jax.ShapeDtypeStruct((n_rows, Rpad, tn), out_dtype),
        grid_spec=pltpu.PrefetchScalarGridSpec(
            num_scalar_prefetch=0,
            grid=(Rpad // tr,),
            in_specs=[pl.BlockSpec((tr, tn), lambda i: (i, 0))],
            out_specs=pl.BlockSpec((n_rows, tr, tn), lambda i: (0, i, 0)),
        ),
        compiler_params=pltpu.CompilerParams(
            dimension_semantics=("parallel",),
            vmem_limit_bytes=vmem_limit),
        cost_estimate=cost,
    )(x2)

    # Feature-major [n_rows, Npad]; strip padding only if any was added.
    out = out.reshape(n_rows, Npad)
    if Npad != N:
        out = out[:, :N]
    if feature_major:
        # Zero extra HBM passes: pure reshape of the kernel output.
        return out.reshape((n_rows,) + lead + (D,))
    # torch layout: [x (D), sin(f0*x) (D), cos(f0*x) (D), sin(f1*x) (D), ...]
    # This permutation re-touches the n_rows-sized output once; use
    # feature_major=True to skip it when the consumer can absorb the reorder.
    out = out.reshape(n_rows, M, D)
    out = jnp.transpose(out, (1, 0, 2)).reshape(*lead, out_features)
    return out


def _reference(x, *, n_freqs, max_freq_log2, min_freq_log2=0.0,
               log_sampling=True, include_input=True):
    """Pure-JAX reference mirroring the PyTorch forward (for verification)."""
    freqs = jnp.asarray(_freq_bands(n_freqs, max_freq_log2, min_freq_log2,
                                    log_sampling), dtype=x.dtype)
    out = []
    if include_input:
        out.append(x)
    if freqs.shape[0] > 0:
        angles = x[..., None, :] * freqs[:, None]                    # [..., F, D]
        angles = jnp.stack([angles, angles + np.pi / 2.0], axis=-2)  # [..., F, 2, D]
        feats = jnp.sin(angles).reshape(*x.shape[:-1], -1)
        out.append(feats)
    if not out:
        return jnp.zeros((*x.shape[:-1], 0), dtype=x.dtype)
    return jnp.concatenate(out, axis=-1)


if __name__ == "__main__":
    key = jax.random.PRNGKey(0)

    # Module config: input_dim=4, N_freqs=6, max_freq_log2=5, log-sampled,
    # include_input=True -> out_features = 4 + 4*6*2 = 52, n_rows = 13.
    input_dim, n_freqs, max_freq_log2 = 4, 6, 5
    k1, k2, k3 = jax.random.split(key, 3)

    # Test 1: default torch layout; N = 128*4 = 512 divides tn -> no padding.
    x1 = jax.random.normal(k1, (2, 64, input_dim), dtype=jnp.float32)
    y1 = jax.block_until_ready(
        sinusoidal_embed(x1, n_freqs=n_freqs, max_freq_log2=max_freq_log2))
    y1_ref = _reference(x1, n_freqs=n_freqs, max_freq_log2=max_freq_log2)
    assert y1.shape == (2, 64, 52), y1.shape
    np.testing.assert_allclose(np.asarray(y1), np.asarray(y1_ref),
                               rtol=1e-5, atol=1e-4)

    # Test 1b: feature-major output (no wrapper permutation pass).
    y1_fm = jax.block_until_ready(
        sinusoidal_embed(x1, n_freqs=n_freqs, max_freq_log2=max_freq_log2,
                         feature_major=True))
    assert y1_fm.shape == (13, 2, 64, input_dim), y1_fm.shape
    y1_fm_interleaved = jnp.moveaxis(y1_fm, 0, -2).reshape(2, 64, 52)
    np.testing.assert_allclose(np.asarray(y1_fm_interleaved), np.asarray(y1_ref),
                               rtol=1e-5, atol=1e-4)

    # Test 1c: bf16 output (f32 math, cast only at the final stores).
    y1_bf = jax.block_until_ready(
        sinusoidal_embed(x1, n_freqs=n_freqs, max_freq_log2=max_freq_log2,
                         out_dtype=jnp.bfloat16))
    assert y1_bf.dtype == jnp.bfloat16 and y1_bf.shape == (2, 64, 52)
    np.testing.assert_allclose(np.asarray(y1_bf, dtype=np.float32),
                               np.asarray(y1_ref), rtol=2e-2, atol=2e-2)

    # Test 2: non-tile-multiple batch -> exercises padding + multi-block grid
    # (small block_rows/block_cols only to exercise the tail path at test size).
    x2 = jax.random.normal(k2, (2, 300, input_dim), dtype=jnp.float32)
    y2 = jax.block_until_ready(
        sinusoidal_embed(x2, n_freqs=n_freqs, max_freq_log2=max_freq_log2,
                         block_rows=8, block_cols=128))
    y2_ref = _reference(x2, n_freqs=n_freqs, max_freq_log2=max_freq_log2)
    assert y2.shape == (2, 300, 52), y2.shape
    np.testing.assert_allclose(np.asarray(y2), np.asarray(y2_ref),
                               rtol=1e-5, atol=1e-4)

    # Test 3: include_input=False, linear frequency sampling, tiny input.
    x3 = jax.random.normal(k3, (3, input_dim), dtype=jnp.float32)
    y3 = jax.block_until_ready(
        sinusoidal_embed(x3, n_freqs=4, max_freq_log2=3, log_sampling=False,
                         include_input=False))
    y3_ref = _reference(x3, n_freqs=4, max_freq_log2=3, log_sampling=False,
                        include_input=False)
    assert y3.shape == (3, 4 * 4 * 2), y3.shape
    np.testing.assert_allclose(np.asarray(y3), np.asarray(y3_ref),
                               rtol=1e-5, atol=1e-4)

    print("KERNEL_OK")
</pallas_src>

<mosaic_0001>
module attributes {stable_mosaic.version = 11 : i64} {
  func.func @_sinusoidal_kernel(%arg0: i32, %arg1: memref<1x512xf32, #tpu.memory_space<vmem>>, %arg2: memref<13x1x512xf32, #tpu.memory_space<vmem>>) attributes {dimension_semantics = [#tpu.dimension_semantics<parallel>], iteration_bounds = array<i64: 1>, scalar_prefetch = 0 : i64, scratch_operands = 0 : i64, tpu.core_type = #tpu.core_type<tc>, window_params = [{transform_indices = @transform_0, window_bounds = array<i64: 1, 512>}, {transform_indices = @transform_1, window_bounds = array<i64: 13, 1, 512>}]} {
    %c0 = arith.constant 0 : index
    %c0_0 = arith.constant 0 : index
    %0 = vector.load %arg1[%c0, %c0_0] : memref<1x512xf32, #tpu.memory_space<vmem>>, vector<1x512xf32>
    %c0_1 = arith.constant 0 : index
    %c0_2 = arith.constant 0 : index
    %1 = vector.load %arg1[%c0_1, %c0_2] : memref<1x512xf32, #tpu.memory_space<vmem>>, vector<1x512xf32>
    %c0_3 = arith.constant 0 : index
    %c0_4 = arith.constant 0 : index
    %c0_5 = arith.constant 0 : index
    %2 = vector.load %arg2[%c0_3, %c0_4, %c0_5] : memref<13x1x512xf32, #tpu.memory_space<vmem>>, vector<1x1x512xf32>
    %3 = vector.shape_cast %2 : vector<1x1x512xf32> to vector<1x512xf32>
    %4 = vector.shape_cast %1 : vector<1x512xf32> to vector<1x1x512xf32>
    tpu.vector_store %arg2[%c0_3, %c0_4, %c0_5], %4 {strides = array<i32>} : memref<13x1x512xf32, #tpu.memory_space<vmem>>, vector<1x1x512xf32>,
    %cst = arith.constant 1.000000e+00 : f32
    %5 = vector.broadcast %cst : f32 to vector<1x512xf32>
    %6 = arith.mulf %0, %5 : vector<1x512xf32>
    %7 = math.sin %6 : vector<1x512xf32>
    %c1 = arith.constant 1 : index
    %c0_6 = arith.constant 0 : index
    %c0_7 = arith.constant 0 : index
    %8 = vector.load %arg2[%c1, %c0_6, %c0_7] : memref<13x1x512xf32, #tpu.memory_space<vmem>>, vector<1x1x512xf32>
    %9 = vector.shape_cast %8 : vector<1x1x512xf32> to vector<1x512xf32>
    %10 = vector.shape_cast %7 : vector<1x512xf32> to vector<1x1x512xf32>
    tpu.vector_store %arg2[%c1, %c0_6, %c0_7], %10 {strides = array<i32>} : memref<13x1x512xf32, #tpu.memory_space<vmem>>, vector<1x1x512xf32>,
    %11 = math.cos %6 : vector<1x512xf32>
    %c2 = arith.constant 2 : index
    %c0_8 = arith.constant 0 : index
    %c0_9 = arith.constant 0 : index
    %12 = vector.load %arg2[%c2, %c0_8, %c0_9] : memref<13x1x512xf32, #tpu.memory_space<vmem>>, vector<1x1x512xf32>
    %13 = vector.shape_cast %12 : vector<1x1x512xf32> to vector<1x512xf32>
    %14 = vector.shape_cast %11 : vector<1x512xf32> to vector<1x1x512xf32>
    tpu.vector_store %arg2[%c2, %c0_8, %c0_9], %14 {strides = array<i32>} : memref<13x1x512xf32, #tpu.memory_space<vmem>>, vector<1x1x512xf32>,
    %cst_10 = arith.constant 2.000000e+00 : f32
    %15 = vector.broadcast %cst_10 : f32 to vector<1x512xf32>
    %16 = arith.mulf %0, %15 : vector<1x512xf32>
    %17 = math.sin %16 : vector<1x512xf32>
    %c3 = arith.constant 3 : index
    %c0_11 = arith.constant 0 : index
    %c0_12 = arith.constant 0 : index
    %18 = vector.load %arg2[%c3, %c0_11, %c0_12] : memref<13x1x512xf32, #tpu.memory_space<vmem>>, vector<1x1x512xf32>
    %19 = vector.shape_cast %18 : vector<1x1x512xf32> to vector<1x512xf32>
    %20 = vector.shape_cast %17 : vector<1x512xf32> to vector<1x1x512xf32>
    tpu.vector_store %arg2[%c3, %c0_11, %c0_12], %20 {strides = array<i32>} : memref<13x1x512xf32, #tpu.memory_space<vmem>>, vector<1x1x512xf32>,
    %21 = math.cos %16 : vector<1x512xf32>
    %c4 = arith.constant 4 : index
    %c0_13 = arith.constant 0 : index
    %c0_14 = arith.constant 0 : index
    %22 = vector.load %arg2[%c4, %c0_13, %c0_14] : memref<13x1x512xf32, #tpu.memory_space<vmem>>, vector<1x1x512xf32>
    %23 = vector.shape_cast %22 : vector<1x1x512xf32> to vector<1x512xf32>
    %24 = vector.shape_cast %21 : vector<1x512xf32> to vector<1x1x512xf32>
    tpu.vector_store %arg2[%c4, %c0_13, %c0_14], %24 {strides = array<i32>} : memref<13x1x512xf32, #tpu.memory_space<vmem>>, vector<1x1x512xf32>,
    %cst_15 = arith.constant 4.000000e+00 : f32
    %25 = vector.broadcast %cst_15 : f32 to vector<1x512xf32>
    %26 = arith.mulf %0, %25 : vector<1x512xf32>
    %27 = math.sin %26 : vector<1x512xf32>
    %c5 = arith.constant 5 : index
    %c0_16 = arith.constant 0 : index
    %c0_17 = arith.constant 0 : index
    %28 = vector.load %arg2[%c5, %c0_16, %c0_17] : memref<13x1x512xf32, #tpu.memory_space<vmem>>, vector<1x1x512xf32>
    %29 = vector.shape_cast %28 : vector<1x1x512xf32> to vector<1x512xf32>
    %30 = vector.shape_cast %27 : vector<1x512xf32> to vector<1x1x512xf32>
    tpu.vector_store %arg2[%c5, %c0_16, %c0_17], %30 {strides = array<i32>} : memref<13x1x512xf32, #tpu.memory_space<vmem>>, vector<1x1x512xf32>,
    %31 = math.cos %26 : vector<1x512xf32>
    %c6 = arith.constant 6 : index
    %c0_18 = arith.constant 0 : index
    %c0_19 = arith.constant 0 : index
    %32 = vector.load %arg2[%c6, %c0_18, %c0_19] : memref<13x1x512xf32, #tpu.memory_space<vmem>>, vector<1x1x512xf32>
    %33 = vector.shape_cast %32 : vector<1x1x512xf32> to vector<1x512xf32>
    %34 = vector.shape_cast %31 : vector<1x512xf32> to vector<1x1x512xf32>
    tpu.vector_store %arg2[%c6, %c0_18, %c0_19], %34 {strides = array<i32>} : memref<13x1x512xf32, #tpu.memory_space<vmem>>, vector<1x1x512xf32>,
    %cst_20 = arith.constant 8.000000e+00 : f32
    %35 = vector.broadcast %cst_20 : f32 to vector<1x512xf32>
    %36 = arith.mulf %0, %35 : vector<1x512xf32>
    %37 = math.sin %36 : vector<1x512xf32>
    %c7 = arith.constant 7 : index
    %c0_21 = arith.constant 0 : index
    %c0_22 = arith.constant 0 : index
    %38 = vector.load %arg2[%c7, %c0_21, %c0_22] : memref<13x1x512xf32, #tpu.memory_space<vmem>>, vector<1x1x512xf32>
    %39 = vector.shape_cast %38 : vector<1x1x512xf32> to vector<1x512xf32>
    %40 = vector.shape_cast %37 : vector<1x512xf32> to vector<1x1x512xf32>
    tpu.vector_store %arg2[%c7, %c0_21, %c0_22], %40 {strides = array<i32>} : memref<13x1x512xf32, #tpu.memory_space<vmem>>, vector<1x1x512xf32>,
    %41 = math.cos %36 : vector<1x512xf32>
    %c8 = arith.constant 8 : index
    %c0_23 = arith.constant 0 : index
    %c0_24 = arith.constant 0 : index
    %42 = vector.load %arg2[%c8, %c0_23, %c0_24] : memref<13x1x512xf32, #tpu.memory_space<vmem>>, vector<1x1x512xf32>
    %43 = vector.shape_cast %42 : vector<1x1x512xf32> to vector<1x512xf32>
    %44 = vector.shape_cast %41 : vector<1x512xf32> to vector<1x1x512xf32>
    tpu.vector_store %arg2[%c8, %c0_23, %c0_24], %44 {strides = array<i32>} : memref<13x1x512xf32, #tpu.memory_space<vmem>>, vector<1x1x512xf32>,
    %cst_25 = arith.constant 1.600000e+01 : f32
    %45 = vector.broadcast %cst_25 : f32 to vector<1x512xf32>
    %46 = arith.mulf %0, %45 : vector<1x512xf32>
    %47 = math.sin %46 : vector<1x512xf32>
    %c9 = arith.constant 9 : index
    %c0_26 = arith.constant 0 : index
    %c0_27 = arith.constant 0 : index
    %48 = vector.load %arg2[%c9, %c0_26, %c0_27] : memref<13x1x512xf32, #tpu.memory_space<vmem>>, vector<1x1x512xf32>
    %49 = vector.shape_cast %48 : vector<1x1x512xf32> to vector<1x512xf32>
    %50 = vector.shape_cast %47 : vector<1x512xf32> to vector<1x1x512xf32>
    tpu.vector_store %arg2[%c9, %c0_26, %c0_27], %50 {strides = array<i32>} : memref<13x1x512xf32, #tpu.memory_space<vmem>>, vector<1x1x512xf32>,
    %51 = math.cos %46 : vector<1x512xf32>
    %c10 = arith.constant 10 : index
    %c0_28 = arith.constant 0 : index
    %c0_29 = arith.constant 0 : index
    %52 = vector.load %arg2[%c10, %c0_28, %c0_29] : memref<13x1x512xf32, #tpu.memory_space<vmem>>, vector<1x1x512xf32>
    %53 = vector.shape_cast %52 : vector<1x1x512xf32> to vector<1x512xf32>
    %54 = vector.shape_cast %51 : vector<1x512xf32> to vector<1x1x512xf32>
    tpu.vector_store %arg2[%c10, %c0_28, %c0_29], %54 {strides = array<i32>} : memref<13x1x512xf32, #tpu.memory_space<vmem>>, vector<1x1x512xf32>,
    %cst_30 = arith.constant 3.200000e+01 : f32
    %55 = vector.broadcast %cst_30 : f32 to vector<1x512xf32>
    %56 = arith.mulf %0, %55 : vector<1x512xf32>
    %57 = math.sin %56 : vector<1x512xf32>
    %c11 = arith.constant 11 : index
    %c0_31 = arith.constant 0 : index
    %c0_32 = arith.constant 0 : index
    %58 = vector.load %arg2[%c11, %c0_31, %c0_32] : memref<13x1x512xf32, #tpu.memory_space<vmem>>, vector<1x1x512xf32>
    %59 = vector.shape_cast %58 : vector<1x1x512xf32> to vector<1x512xf32>
    %60 = vector.shape_cast %57 : vector<1x512xf32> to vector<1x1x512xf32>
    tpu.vector_store %arg2[%c11, %c0_31, %c0_32], %60 {strides = array<i32>} : memref<13x1x512xf32, #tpu.memory_space<vmem>>, vector<1x1x512xf32>,
    %61 = math.cos %56 : vector<1x512xf32>
    %c12 = arith.constant 12 : index
    %c0_33 = arith.constant 0 : index
    %c0_34 = arith.constant 0 : index
    %62 = vector.load %arg2[%c12, %c0_33, %c0_34] : memref<13x1x512xf32, #tpu.memory_space<vmem>>, vector<1x1x512xf32>
    %63 = vector.shape_cast %62 : vector<1x1x512xf32> to vector<1x512xf32>
    %64 = vector.shape_cast %61 : vector<1x512xf32> to vector<1x1x512xf32>
    tpu.vector_store %arg2[%c12, %c0_33, %c0_34], %64 {strides = array<i32>} : memref<13x1x512xf32, #tpu.memory_space<vmem>>, vector<1x1x512xf32>,
    return
  }
  func.func @transform_0(%arg0: i32) -> (i32, i32) {
    %c0_i32 = arith.constant 0 : i32
    %c0_i32_0 = arith.constant 0 : i32
    return %arg0, %c0_i32 : i32, i32
  }
  func.func @transform_1(%arg0: i32) -> (i32, i32, i32) {
    %c0_i32 = arith.constant 0 : i32
    %c0_i32_0 = arith.constant 0 : i32
    %c0_i32_1 = arith.constant 0 : i32
    return %c0_i32, %arg0, %c0_i32_0 : i32, i32, i32
  }
}

</mosaic_0001>

<llo_original>
// kernel: tpu_custom_call.1
$region0: #{tpu_custom_call.1}
  #allocation0 [shape = 'u32[]', space=smem, size = 0x4, offset = 0x4, fixed_abs, tag = 'smem constant byte address 0x4 - core index']
  #allocation1 [shape = 'u32[144,128]{1,0:T(1,128)}', space=vmem, size = 0x12000, scoped, tag = 'internal scratch']
  %s0 = inlined_call_operand.hbm [shape: f32[1,512], index: 0, kind: input, shape index: {}]
  %s1 = inlined_call_operand.hbm [shape: f32[13,1,512], index: 1, kind: output, shape index: {}]
  %s2 = sld [smem:[#allocation0]]
  $region18: #{tpu_custom_call.1} parent=0
    _
  %s4 = ssub.s32 1, %s2
  %s5 = scalar_select 0, %s4, %s2
  $region1: #{tpu_custom_call.1} parent=0
    #allocation2 [shape = 'u8[2048]{0}', space=vmem, size = 0x800, scoped, tag = 'input window, operand 0, single buffered']
    #allocation3 [shape = 's32[1]{0}', space=sflag, size = 0x4, scoped, tag = 'scoped memory for tpu_custom_call.1']
    #allocation4 [shape = 's32[1]{0}', space=sflag, size = 0x4, scoped, tag = 'scoped memory for tpu_custom_call.1']
    #allocation5 [shape = 'u8[26624]{0}', space=vmem, size = 0x6800, scoped, tag = 'output window, operand 0, single buffered']
    %6 = vsyncpa [#allocation3], 0
    %7 = vsyncpa [#allocation4], 0
    // Predicated region
    $region2: #{tpu_custom_call.1} parent=1 // pred_check
      _
    $region3: #{tpu_custom_call.1} parent=1 // pred_check_branch
      %9 = sbr.rel (0) target = $region5
    $region4: #{tpu_custom_call.1} parent=1 // pred_region
      %s11 = ssub.s32 64, 64
      %12 = vsyncadd [#allocation3], %s11
      %s14 = sshll.u32 [#allocation2], 4
      %s15 = int_to_ptr.vmem [resolvable:$true] %s14
      %17 = dma.hbm_to_vmem [thread:$0]  %s0, 64, %s15, [#allocation3]
    $region5: #{tpu_custom_call.1} parent=1 // pred_fallthru
      _
    // Predicated region
    $region6: #{tpu_custom_call.1} parent=1 // pred_check
      _
    $region7: #{tpu_custom_call.1} parent=1 // pred_check_branch
      %19 = sbr.rel (0) target = $region9
    $region8: #{tpu_custom_call.1} parent=1 // pred_region
      %20 = dma.done [#allocation3], 64
    $region9: #{tpu_custom_call.1} parent=1 // pred_fallthru
      _
    %v21 = vld [vmem:[#allocation2] sm:$0xf]
    %v22 = vlaneseq
    %vm23 = vcmp.ge.s32.totalorder %v22, 0
    %vm24 = vcmp.lt.s32.totalorder %v22, 512
    %vm25 = vmand %vm23, %vm24
    %26 = vst.msk [vmem:[#allocation5] sm:$0xf] %vm25, %v21
    %v27 = vand.u32 2147483647, %v21
    %vm28 = vcmp.le.f32.partialorder %v27, 0.7853982
    %vm29 = vcmp.lt.s32.totalorder %v21, 0
    %v30 = vand.u32 %v21, 2139095040
    %v31 = vshrl.u32 %v30, 23
    %v32 = vsub.s32 %v31, 127
    %v33 = vand.u32 2147483647, %v21
    %v34 = vand.u32 %v33, 8388607
    %v35 = vor.u32 %v34, 8388608
    %v36 = vsub.s32 0, %v35
    %v37 = vadd.s32 %v32, 1
    %vm38 = vcmp.gt.s32.totalorder %v37, 0
    %v39 = vsel %vm38, %v37, 0
    %v40 = vshrl.u32 %v39, 5
    %v41 = vand.u32 %v39, 31
    %v42 = vsub.s32 32, %v41
    %v43 = vshrl.u32 683565275, %v42
    %v44 = vshll.u32 683565275, %v41
    %v45 = vshrl.u32 2475754826, %v42
    %v46 = vor.u32 %v44, %v45
    %v47 = vshll.u32 2475754826, %v41
    %v48 = vshrl.u32 2131351028, %v42
    %v49 = vor.u32 %v47, %v48
    %v50 = vshll.u32 2131351028, %v41
    %v51 = vshrl.u32 2102212464, %v42
    %v52 = vor.u32 %v50, %v51
    %v53 = vshll.u32 2102212464, %v41
    %v54 = vshrl.u32 920167782, %v42
    %v55 = vor.u32 %v53, %v54
    %v56 = vshll.u32 920167782, %v41
    %v57 = vshrl.u32 1326507024, %v42
    %v58 = vor.u32 %v56, %v57
    %vm59 = vcmp.lt.s32.totalorder %v40, 1
    %vm60 = vcmp.lt.s32.totalorder %v40, 2
    %vm61 = vcmp.lt.s32.totalorder %v40, 3
    %vm62 = vcmp.lt.s32.totalorder %v40, 4
    %v63 = vsel %vm59, %v43, %v46
    %v64 = vsel %vm62, %v52, 2102212464
    %v65 = vsel %vm61, %v49, %v64
    %v66 = vsel %vm60, %v63, %v65
    %v67 = vsel %vm59, %v46, %v49
    %v68 = vsel %vm62, %v55, 920167782
    %v69 = vsel %vm61, %v52, %v68
    %v70 = vsel %vm60, %v67, %v69
    %v71 = vsel %vm59, %v49, %v52
    %v72 = vsel %vm62, %v58, 1326507024
    %v73 = vsel %vm61, %v55, %v72
    %v74 = vsel %vm60, %v71, %v73
    %v75 = vshll.u32 %v35, 8
    %v76 = vmul.u32.u64.compose %v75, %v74
    %v77 = vextract.low.u32 %v76
    %v78 = vextract.high.u32 %v76
    %v79 = vmul.u32.u64.compose %v75, %v70
    %v80 = vextract.low.u32 %v79
    %v81 = vextract.high.u32 %v79
    %v82 = vmul.u32 %v75, %v66
    %v83 = vadd.s32 %v78, %v80
    %vm84 = vc.u32 %v78, %v80
    %v85 = vadd.s32 %v81, 1
    %v86 = vsel %vm84, %v85, %v81
    %v87 = vadd.s32 %v82, %v86
    %v88 = vadd.s32 %v87, 536870912
    %v89 = vshrl.u32 %v88, 30
    %v90 = vshll.u32 %v89, 30
    %v91 = vsub.s32 %v87, %v90
    %vm92 = vcmp.lt.s32.totalorder %v91, 0
    %v93 = vsub.s32 0, %v91
    %v94 = vsel %vm92, %v93, %v91
    %v95 = vclz %v94
    %v96 = vsub.s32 %v95, 2
    %vm97 = vcmp.gt.s32.totalorder 0, %v96
    %v98 = vsel %vm97, 0, %v96
    %v99 = vsub.s32 32, %v98
    %v100 = vshll.u32 %v91, %v98
    %v101 = vshrl.u32 %v83, %v99
    %v102 = vor.u32 %v100, %v101
    %v103 = vsub.s32 4294967266, %v98
    %v104 = vadd.s32 %v103, 127
    %v105 = vshll.u32 %v104, 23
    %v106 = vor.u32 4788187, %v105
    %v107 = vand.u32 2147483647, %v106
    %v109 = vcvt.s32.f32 %v102
    %v110 = vmul.f32 %v109, %v107
    %v111 = vxor.u32 %v110, 2147483648
    %v112 = vsel %vm29, %v111, %v110
    %v113 = vsub.s32 4, %v89
    %v114 = vsel %vm29, %v113, %v89
    %v115 = vsel %vm28, %v21, %v112
    %v116 = vsel %vm28, 0, %v114
    %v117 = vcosq.f32.pop %v115
    %v118 = vsinq.f32.pop %v115
    %vm119 = vweird.f32 %v21
    %v120 = vadd.s32 %v116, 3
    %v121 = vand.u32 %v120, 3
    %vm122 = vcmp.lt.s32.totalorder %v121, 2
    %vm123 = vcmp.eq.s32.totalorder %v121, 0
    %v124 = vxor.u32 %v118, 2147483648
    %v125 = vsel %vm123, %v117, %v124
    %vm126 = vcmp.eq.s32.totalorder %v121, 2
    %v127 = vxor.u32 %v117, 2147483648
    %v128 = vsel %vm126, %v127, %v118
    %v129 = vsel %vm122, %v125, %v128
    %v130 = vsel %vm119, nan, %v129
    %s131 = scalar_lea.vmem [#allocation5], 4
    %132 = vst.msk [vmem:[%s131] sm:$0xf] %vm25, %v130
    %v133 = vand.u32 2147483647, %v21
    %vm134 = vcmp.le.f32.partialorder %v133, 0.7853982
    %vm135 = vcmp.lt.s32.totalorder %v21, 0
    %v136 = vand.u32 %v21, 2139095040
    %v137 = vshrl.u32 %v136, 23
    %v138 = vsub.s32 %v137, 127
    %v139 = vand.u32 2147483647, %v21
    %v140 = vand.u32 %v139, 8388607
    %v141 = vor.u32 %v140, 8388608
    %v142 = vsub.s32 0, %v141
    %v143 = vadd.s32 %v138, 1
    %vm144 = vcmp.gt.s32.totalorder %v143, 0
    %v145 = vsel %vm144, %v143, 0
    %v146 = vshrl.u32 %v145, 5
    %v147 = vand.u32 %v145, 31
    %v148 = vsub.s32 32, %v147
    %v149 = vshrl.u32 683565275, %v148
    %v150 = vshll.u32 683565275, %v147
    %v151 = vshrl.u32 2475754826, %v148
    %v152 = vor.u32 %v150, %v151
    %v153 = vshll.u32 2475754826, %v147
    %v154 = vshrl.u32 2131351028, %v148
    %v155 = vor.u32 %v153, %v154
    %v156 = vshll.u32 2131351028, %v147
    %v157 = vshrl.u32 2102212464, %v148
    %v158 = vor.u32 %v156, %v157
    %v159 = vshll.u32 2102212464, %v147
    %v160 = vshrl.u32 920167782, %v148
    %v161 = vor.u32 %v159, %v160
    %v162 = vshll.u32 920167782, %v147
    %v163 = vshrl.u32 1326507024, %v148
    %v164 = vor.u32 %v162, %v163
    %vm165 = vcmp.lt.s32.totalorder %v146, 1
    %vm166 = vcmp.lt.s32.totalorder %v146, 2
    %vm167 = vcmp.lt.s32.totalorder %v146, 3
    %vm168 = vcmp.lt.s32.totalorder %v146, 4
    %v169 = vsel %vm165, %v149, %v152
    %v170 = vsel %vm168, %v158, 2102212464
    %v171 = vsel %vm167, %v155, %v170
    %v172 = vsel %vm166, %v169, %v171
    %v173 = vsel %vm165, %v152, %v155
    %v174 = vsel %vm168, %v161, 920167782
    %v175 = vsel %vm167, %v158, %v174
    %v176 = vsel %vm166, %v173, %v175
    %v177 = vsel %vm165, %v155, %v158
    %v178 = vsel %vm168, %v164, 1326507024
    %v179 = vsel %vm167, %v161, %v178
    %v180 = vsel %vm166, %v177, %v179
    %v181 = vshll.u32 %v141, 8
    %v182 = vmul.u32.u64.compose %v181, %v180
    %v183 = vextract.low.u32 %v182
    %v184 = vextract.high.u32 %v182
    %v185 = vmul.u32.u64.compose %v181, %v176
    %v186 = vextract.low.u32 %v185
    %v187 = vextract.high.u32 %v185
    %v188 = vmul.u32 %v181, %v172
    %v189 = vadd.s32 %v184, %v186
    %vm190 = vc.u32 %v184, %v186
    %v191 = vadd.s32 %v187, 1
    %v192 = vsel %vm190, %v191, %v187
    %v193 = vadd.s32 %v188, %v192
    %v194 = vadd.s32 %v193, 536870912
    %v195 = vshrl.u32 %v194, 30
    %v196 = vshll.u32 %v195, 30
    %v197 = vsub.s32 %v193, %v196
    %vm198 = vcmp.lt.s32.totalorder %v197, 0
    %v199 = vsub.s32 0, %v197
    %v200 = vsel %vm198, %v199, %v197
    %v201 = vclz %v200
    %v202 = vsub.s32 %v201, 2
    %vm203 = vcmp.gt.s32.totalorder 0, %v202
    %v204 = vsel %vm203, 0, %v202
    %v205 = vsub.s32 32, %v204
    %v206 = vshll.u32 %v197, %v204
    %v207 = vshrl.u32 %v189, %v205
    %v208 = vor.u32 %v206, %v207
    %v209 = vsub.s32 4294967266, %v204
    %v210 = vadd.s32 %v209, 127
    %v211 = vshll.u32 %v210, 23
    %v212 = vor.u32 4788187, %v211
    %v213 = vand.u32 2147483647, %v212
    %v215 = vcvt.s32.f32 %v208
    %v216 = vmul.f32 %v215, %v213
    %v217 = vxor.u32 %v216, 2147483648
    %v218 = vsel %vm135, %v217, %v216
    %v219 = vsub.s32 4, %v195
    %v220 = vsel %vm135, %v219, %v195
    %v221 = vsel %vm134, %v21, %v218
    %v222 = vsel %vm134, 0, %v220
    %v223 = vcosq.f32.pop %v221
    %v224 = vsinq.f32.pop %v221
    %vm225 = vweird.f32 %v21
    %v226 = vand.u32 %v222, 3
    %vm227 = vcmp.lt.s32.totalorder %v226, 2
    %vm228 = vcmp.eq.s32.totalorder %v226, 0
    %v229 = vxor.u32 %v224, 2147483648
    %v230 = vsel %vm228, %v223, %v229
    %vm231 = vcmp.eq.s32.totalorder %v226, 2
    %v232 = vxor.u32 %v223, 2147483648
    %v233 = vsel %vm231, %v232, %v224
    %v234 = vsel %vm227, %v230, %v233
    %v235 = vsel %vm225, nan, %v234
    %s236 = scalar_lea.vmem [#allocation5], 8
    %237 = vst.msk [vmem:[%s236] sm:$0xf] %vm25, %v235
    %v238 = vmul.f32 %v21, 2.0
    %v239 = vand.u32 2147483647, %v238
    %vm240 = vcmp.le.f32.partialorder %v239, 0.7853982
    %vm241 = vcmp.lt.s32.totalorder %v238, 0
    %v242 = vand.u32 %v238, 2139095040
    %v243 = vshrl.u32 %v242, 23
    %v244 = vsub.s32 %v243, 127
    %v245 = vand.u32 2147483647, %v238
    %v246 = vand.u32 %v245, 8388607
    %v247 = vor.u32 %v246, 8388608
    %v248 = vsub.s32 0, %v247
    %v249 = vadd.s32 %v244, 1
    %vm250 = vcmp.gt.s32.totalorder %v249, 0
    %v251 = vsel %vm250, %v249, 0
    %v252 = vshrl.u32 %v251, 5
    %v253 = vand.u32 %v251, 31
    %v254 = vsub.s32 32, %v253
    %v255 = vshrl.u32 683565275, %v254
    %v256 = vshll.u32 683565275, %v253
    %v257 = vshrl.u32 2475754826, %v254
    %v258 = vor.u32 %v256, %v257
    %v259 = vshll.u32 2475754826, %v253
    %v260 = vshrl.u32 2131351028, %v254
    %v261 = vor.u32 %v259, %v260
    %v262 = vshll.u32 2131351028, %v253
    %v263 = vshrl.u32 2102212464, %v254
    %v264 = vor.u32 %v262, %v263
    %v265 = vshll.u32 2102212464, %v253
    %v266 = vshrl.u32 920167782, %v254
    %v267 = vor.u32 %v265, %v266
    %v268 = vshll.u32 920167782, %v253
    %v269 = vshrl.u32 1326507024, %v254
    %v270 = vor.u32 %v268, %v269
    %vm271 = vcmp.lt.s32.totalorder %v252, 1
    %vm272 = vcmp.lt.s32.totalorder %v252, 2
    %vm273 = vcmp.lt.s32.totalorder %v252, 3
    %vm274 = vcmp.lt.s32.totalorder %v252, 4
    %v275 = vsel %vm271, %v255, %v258
    %v276 = vsel %vm274, %v264, 2102212464
    %v277 = vsel %vm273, %v261, %v276
    %v278 = vsel %vm272, %v275, %v277
    %v279 = vsel %vm271, %v258, %v261
    %v280 = vsel %vm274, %v267, 920167782
    %v281 = vsel %vm273, %v264, %v280
    %v282 = vsel %vm272, %v279, %v281
    %v283 = vsel %vm271, %v261, %v264
    %v284 = vsel %vm274, %v270, 1326507024
    %v285 = vsel %vm273, %v267, %v284
    %v286 = vsel %vm272, %v283, %v285
    %v287 = vshll.u32 %v247, 8
    %v288 = vmul.u32.u64.compose %v287, %v286
    %v289 = vextract.low.u32 %v288
    %v290 = vextract.high.u32 %v288
    %v291 = vmul.u32.u64.compose %v287, %v282
    %v292 = vextract.low.u32 %v291
    %v293 = vextract.high.u32 %v291
    %v294 = vmul.u32 %v287, %v278
    %v295 = vadd.s32 %v290, %v292
    %vm296 = vc.u32 %v290, %v292
    %v297 = vadd.s32 %v293, 1
    %v298 = vsel %vm296, %v297, %v293
    %v299 = vadd.s32 %v294, %v298
    %v300 = vadd.s32 %v299, 536870912
    %v301 = vshrl.u32 %v300, 30
    %v302 = vshll.u32 %v301, 30
    %v303 = vsub.s32 %v299, %v302
    %vm304 = vcmp.lt.s32.totalorder %v303, 0
    %v305 = vsub.s32 0, %v303
    %v306 = vsel %vm304, %v305, %v303
    %v307 = vclz %v306
    %v308 = vsub.s32 %v307, 2
    %vm309 = vcmp.gt.s32.totalorder 0, %v308
    %v310 = vsel %vm309, 0, %v308
    %v311 = vsub.s32 32, %v310
    %v312 = vshll.u32 %v303, %v310
    %v313 = vshrl.u32 %v295, %v311
    %v314 = vor.u32 %v312, %v313
    %v315 = vsub.s32 4294967266, %v310
    %v316 = vadd.s32 %v315, 127
    %v317 = vshll.u32 %v316, 23
    %v318 = vor.u32 4788187, %v317
    %v319 = vand.u32 2147483647, %v318
    %v321 = vcvt.s32.f32 %v314
    %v322 = vmul.f32 %v321, %v319
    %v323 = vxor.u32 %v322, 2147483648
    %v324 = vsel %vm241, %v323, %v322
    %v325 = vsub.s32 4, %v301
    %v326 = vsel %vm241, %v325, %v301
    %v327 = vsel %vm240, %v238, %v324
    %v328 = vsel %vm240, 0, %v326
    %v329 = vcosq.f32.pop %v327
    %v330 = vsinq.f32.pop %v327
    %vm331 = vweird.f32 %v238
    %v332 = vadd.s32 %v328, 3
    %v333 = vand.u32 %v332, 3
    %vm334 = vcmp.lt.s32.totalorder %v333, 2
    %vm335 = vcmp.eq.s32.totalorder %v333, 0
    %v336 = vxor.u32 %v330, 2147483648
    %v337 = vsel %vm335, %v329, %v336
    %vm338 = vcmp.eq.s32.totalorder %v333, 2
    %v339 = vxor.u32 %v329, 2147483648
    %v340 = vsel %vm338, %v339, %v330
    %v341 = vsel %vm334, %v337, %v340
    %v342 = vsel %vm331, nan, %v341
    %s343 = scalar_lea.vmem [#allocation5], 12
    %344 = vst.msk [vmem:[%s343] sm:$0xf] %vm25, %v342
    %v345 = vand.u32 2147483647, %v238
    %vm346 = vcmp.le.f32.partialorder %v345, 0.7853982
    %vm347 = vcmp.lt.s32.totalorder %v238, 0
    %v348 = vand.u32 %v238, 2139095040
    %v349 = vshrl.u32 %v348, 23
    %v350 = vsub.s32 %v349, 127
    %v351 = vand.u32 2147483647, %v238
    %v352 = vand.u32 %v351, 8388607
    %v353 = vor.u32 %v352, 8388608
    %v354 = vsub.s32 0, %v353
    %v355 = vadd.s32 %v350, 1
    %vm356 = vcmp.gt.s32.totalorder %v355, 0
    %v357 = vsel %vm356, %v355, 0
    %v358 = vshrl.u32 %v357, 5
    %v359 = vand.u32 %v357, 31
    %v360 = vsub.s32 32, %v359
    %v361 = vshrl.u32 683565275, %v360
    %v362 = vshll.u32 683565275, %v359
    %v363 = vshrl.u32 2475754826, %v360
    %v364 = vor.u32 %v362, %v363
    %v365 = vshll.u32 2475754826, %v359
    %v366 = vshrl.u32 2131351028, %v360
    %v367 = vor.u32 %v365, %v366
    %v368 = vshll.u32 2131351028, %v359
    %v369 = vshrl.u32 2102212464, %v360
    %v370 = vor.u32 %v368, %v369
    %v371 = vshll.u32 2102212464, %v359
    %v372 = vshrl.u32 920167782, %v360
    %v373 = vor.u32 %v371, %v372
    %v374 = vshll.u32 920167782, %v359
    %v375 = vshrl.u32 1326507024, %v360
    %v376 = vor.u32 %v374, %v375
    %vm377 = vcmp.lt.s32.totalorder %v358, 1
    %vm378 = vcmp.lt.s32.totalorder %v358, 2
    %vm379 = vcmp.lt.s32.totalorder %v358, 3
    %vm380 = vcmp.lt.s32.totalorder %v358, 4
    %v381 = vsel %vm377, %v361, %v364
    %v382 = vsel %vm380, %v370, 2102212464
    %v383 = vsel %vm379, %v367, %v382
    %v384 = vsel %vm378, %v381, %v383
    %v385 = vsel %vm377, %v364, %v367
    %v386 = vsel %vm380, %v373, 920167782
    %v387 = vsel %vm379, %v370, %v386
    %v388 = vsel %vm378, %v385, %v387
    %v389 = vsel %vm377, %v367, %v370
    %v390 = vsel %vm380, %v376, 1326507024
    %v391 = vsel %vm379, %v373, %v390
    %v392 = vsel %vm378, %v389, %v391
    %v393 = vshll.u32 %v353, 8
    %v394 = vmul.u32.u64.compose %v393, %v392
    %v395 = vextract.low.u32 %v394
    %v396 = vextract.high.u32 %v394
    %v397 = vmul.u32.u64.compose %v393, %v388
    %v398 = vextract.low.u32 %v397
    %v399 = vextract.high.u32 %v397
    %v400 = vmul.u32 %v393, %v384
    %v401 = vadd.s32 %v396, %v398
    %vm402 = vc.u32 %v396, %v398
    %v403 = vadd.s32 %v399, 1
    %v404 = vsel %vm402, %v403, %v399
    %v405 = vadd.s32 %v400, %v404
    %v406 = vadd.s32 %v405, 536870912
    %v407 = vshrl.u32 %v406, 30
    %v408 = vshll.u32 %v407, 30
    %v409 = vsub.s32 %v405, %v408
    %vm410 = vcmp.lt.s32.totalorder %v409, 0
    %v411 = vsub.s32 0, %v409
    %v412 = vsel %vm410, %v411, %v409
    %v413 = vclz %v412
    %v414 = vsub.s32 %v413, 2
    %vm415 = vcmp.gt.s32.totalorder 0, %v414
    %v416 = vsel %vm415, 0, %v414
    %v417 = vsub.s32 32, %v416
    %v418 = vshll.u32 %v409, %v416
    %v419 = vshrl.u32 %v401, %v417
    %v420 = vor.u32 %v418, %v419
    %v421 = vsub.s32 4294967266, %v416
    %v422 = vadd.s32 %v421, 127
    %v423 = vshll.u32 %v422, 23
    %v424 = vor.u32 4788187, %v423
    %v425 = vand.u32 2147483647, %v424
    %v427 = vcvt.s32.f32 %v420
    %v428 = vmul.f32 %v427, %v425
    %v429 = vxor.u32 %v428, 2147483648
    %v430 = vsel %vm347, %v429, %v428
    %v431 = vsub.s32 4, %v407
    %v432 = vsel %vm347, %v431, %v407
    %v433 = vsel %vm346, %v238, %v430
    %v434 = vsel %vm346, 0, %v432
    %v435 = vcosq.f32.pop %v433
    %v436 = vsinq.f32.pop %v433
    %vm437 = vweird.f32 %v238
    %v438 = vand.u32 %v434, 3
    %vm439 = vcmp.lt.s32.totalorder %v438, 2
    %vm440 = vcmp.eq.s32.totalorder %v438, 0
    %v441 = vxor.u32 %v436, 2147483648
    %v442 = vsel %vm440, %v435, %v441
    %vm443 = vcmp.eq.s32.totalorder %v438, 2
    %v444 = vxor.u32 %v435, 2147483648
    %v445 = vsel %vm443, %v444, %v436
    %v446 = vsel %vm439, %v442, %v445
    %v447 = vsel %vm437, nan, %v446
    %s448 = scalar_lea.vmem [#allocation5], 16
    %449 = vst.msk [vmem:[%s448] sm:$0xf] %vm25, %v447
    %v450 = vmul.f32 %v21, 4.0
    %v451 = vand.u32 2147483647, %v450
    %vm452 = vcmp.le.f32.partialorder %v451, 0.7853982
    %vm453 = vcmp.lt.s32.totalorder %v450, 0
    %v454 = vand.u32 %v450, 2139095040
    %v455 = vshrl.u32 %v454, 23
    %v456 = vsub.s32 %v455, 127
    %v457 = vand.u32 2147483647, %v450
    %v458 = vand.u32 %v457, 8388607
    %v459 = vor.u32 %v458, 8388608
    %v460 = vsub.s32 0, %v459
    %v461 = vadd.s32 %v456, 1
    %vm462 = vcmp.gt.s32.totalorder %v461, 0
    %v463 = vsel %vm462, %v461, 0
    %v464 = vshrl.u32 %v463, 5
    %v465 = vand.u32 %v463, 31
    %v466 = vsub.s32 32, %v465
    %v467 = vshrl.u32 683565275, %v466
    %v468 = vshll.u32 683565275, %v465
    %v469 = vshrl.u32 2475754826, %v466
    %v470 = vor.u32 %v468, %v469
    %v471 = vshll.u32 2475754826, %v465
    %v472 = vshrl.u32 2131351028, %v466
    %v473 = vor.u32 %v471, %v472
    %v474 = vshll.u32 2131351028, %v465
    %v475 = vshrl.u32 2102212464, %v466
    %v476 = vor.u32 %v474, %v475
    %v477 = vshll.u32 2102212464, %v465
    %v478 = vshrl.u32 920167782, %v466
    %v479 = vor.u32 %v477, %v478
    %v480 = vshll.u32 920167782, %v465
    %v481 = vshrl.u32 1326507024, %v466
    %v482 = vor.u32 %v480, %v481
    %vm483 = vcmp.lt.s32.totalorder %v464, 1
    %vm484 = vcmp.lt.s32.totalorder %v464, 2
    %vm485 = vcmp.lt.s32.totalorder %v464, 3
    %vm486 = vcmp.lt.s32.totalorder %v464, 4
    %v487 = vsel %vm483, %v467, %v470
    %v488 = vsel %vm486, %v476, 2102212464
    %v489 = vsel %vm485, %v473, %v488
    %v490 = vsel %vm484, %v487, %v489
    %v491 = vsel %vm483, %v470, %v473
    %v492 = vsel %vm486, %v479, 920167782
    %v493 = vsel %vm485, %v476, %v492
    %v494 = vsel %vm484, %v491, %v493
    %v495 = vsel %vm483, %v473, %v476
    %v496 = vsel %vm486, %v482, 1326507024
    %v497 = vsel %vm485, %v479, %v496
    %v498 = vsel %vm484, %v495, %v497
    %v499 = vshll.u32 %v459, 8
    %v500 = vmul.u32.u64.compose %v499, %v498
    %v501 = vextract.low.u32 %v500
    %v502 = vextract.high.u32 %v500
    %v503 = vmul.u32.u64.compose %v499, %v494
    %v504 = vextract.low.u32 %v503
    %v505 = vextract.high.u32 %v503
    %v506 = vmul.u32 %v499, %v490
    %v507 = vadd.s32 %v502, %v504
    %vm508 = vc.u32 %v502, %v504
    %v509 = vadd.s32 %v505, 1
    %v510 = vsel %vm508, %v509, %v505
    %v511 = vadd.s32 %v506, %v510
    %v512 = vadd.s32 %v511, 536870912
    %v513 = vshrl.u32 %v512, 30
    %v514 = vshll.u32 %v513, 30
    %v515 = vsub.s32 %v511, %v514
    %vm516 = vcmp.lt.s32.totalorder %v515, 0
    %v517 = vsub.s32 0, %v515
    %v518 = vsel %vm516, %v517, %v515
    %v519 = vclz %v518
    %v520 = vsub.s32 %v519, 2
    %vm521 = vcmp.gt.s32.totalorder 0, %v520
    %v522 = vsel %vm521, 0, %v520
    %v523 = vsub.s32 32, %v522
    %v524 = vshll.u32 %v515, %v522
    %v525 = vshrl.u32 %v507, %v523
    %v526 = vor.u32 %v524, %v525
    %v527 = vsub.s32 4294967266, %v522
    %v528 = vadd.s32 %v527, 127
    %v529 = vshll.u32 %v528, 23
    %v530 = vor.u32 4788187, %v529
    %v531 = vand.u32 2147483647, %v530
    %v533 = vcvt.s32.f32 %v526
    %v534 = vmul.f32 %v533, %v531
    %v535 = vxor.u32 %v534, 2147483648
    %v536 = vsel %vm453, %v535, %v534
    %v537 = vsub.s32 4, %v513
    %v538 = vsel %vm453, %v537, %v513
    %v539 = vsel %vm452, %v450, %v536
    %v540 = vsel %vm452, 0, %v538
    %v541 = vcosq.f32.pop %v539
    %v542 = vsinq.f32.pop %v539
    %vm543 = vweird.f32 %v450
    %v544 = vadd.s32 %v540, 3
    %v545 = vand.u32 %v544, 3
    %vm546 = vcmp.lt.s32.totalorder %v545, 2
    %vm547 = vcmp.eq.s32.totalorder %v545, 0
    %v548 = vxor.u32 %v542, 2147483648
    %v549 = vsel %vm547, %v541, %v548
    %vm550 = vcmp.eq.s32.totalorder %v545, 2
    %v551 = vxor.u32 %v541, 2147483648
    %v552 = vsel %vm550, %v551, %v542
    %v553 = vsel %vm546, %v549, %v552
    %v554 = vsel %vm543, nan, %v553
    %s555 = scalar_lea.vmem [#allocation5], 20
    %556 = vst.msk [vmem:[%s555] sm:$0xf] %vm25, %v554
    %v557 = vand.u32 2147483647, %v450
    %vm558 = vcmp.le.f32.partialorder %v557, 0.7853982
    %vm559 = vcmp.lt.s32.totalorder %v450, 0
    %v560 = vand.u32 %v450, 2139095040
    %v561 = vshrl.u32 %v560, 23
    %v562 = vsub.s32 %v561, 127
    %v563 = vand.u32 2147483647, %v450
    %v564 = vand.u32 %v563, 8388607
    %v565 = vor.u32 %v564, 8388608
    %v566 = vsub.s32 0, %v565
    %v567 = vadd.s32 %v562, 1
    %vm568 = vcmp.gt.s32.totalorder %v567, 0
    %v569 = vsel %vm568, %v567, 0
    %v570 = vshrl.u32 %v569, 5
    %v571 = vand.u32 %v569, 31
    %v572 = vsub.s32 32, %v571
    %v573 = vshrl.u32 683565275, %v572
    %v574 = vshll.u32 683565275, %v571
    %v575 = vshrl.u32 2475754826, %v572
    %v576 = vor.u32 %v574, %v575
    %v577 = vshll.u32 2475754826, %v571
    %v578 = vshrl.u32 2131351028, %v572
    %v579 = vor.u32 %v577, %v578
    %v580 = vshll.u32 2131351028, %v571
    %v581 = vshrl.u32 2102212464, %v572
    %v582 = vor.u32 %v580, %v581
    %v583 = vshll.u32 2102212464, %v571
    %v584 = vshrl.u32 920167782, %v572
    %v585 = vor.u32 %v583, %v584
    %v586 = vshll.u32 920167782, %v571
    %v587 = vshrl.u32 1326507024, %v572
    %v588 = vor.u32 %v586, %v587
    %vm589 = vcmp.lt.s32.totalorder %v570, 1
    %vm590 = vcmp.lt.s32.totalorder %v570, 2
    %vm591 = vcmp.lt.s32.totalorder %v570, 3
    %vm592 = vcmp.lt.s32.totalorder %v570, 4
    %v593 = vsel %vm589, %v573, %v576
    %v594 = vsel %vm592, %v582, 2102212464
    %v595 = vsel %vm591, %v579, %v594
    %v596 = vsel %vm590, %v593, %v595
    %v597 = vsel %vm589, %v576, %v579
    %v598 = vsel %vm592, %v585, 920167782
    %v599 = vsel %vm591, %v582, %v598
    %v600 = vsel %vm590, %v597, %v599
    %v601 = vsel %vm589, %v579, %v582
    %v602 = vsel %vm592, %v588, 1326507024
    %v603 = vsel %vm591, %v585, %v602
    %v604 = vsel %vm590, %v601, %v603
    %v605 = vshll.u32 %v565, 8
    %v606 = vmul.u32.u64.compose %v605, %v604
    %v607 = vextract.low.u32 %v606
    %v608 = vextract.high.u32 %v606
    %v609 = vmul.u32.u64.compose %v605, %v600
    %v610 = vextract.low.u32 %v609
    %v611 = vextract.high.u32 %v609
    %v612 = vmul.u32 %v605, %v596
    %v613 = vadd.s32 %v608, %v610
    %vm614 = vc.u32 %v608, %v610
    %v615 = vadd.s32 %v611, 1
    %v616 = vsel %vm614, %v615, %v611
    %v617 = vadd.s32 %v612, %v616
    %v618 = vadd.s32 %v617, 536870912
    %v619 = vshrl.u32 %v618, 30
    %v620 = vshll.u32 %v619, 30
    %v621 = vsub.s32 %v617, %v620
    %vm622 = vcmp.lt.s32.totalorder %v621, 0
    %v623 = vsub.s32 0, %v621
    %v624 = vsel %vm622, %v623, %v621
    %v625 = vclz %v624
    %v626 = vsub.s32 %v625, 2
    %vm627 = vcmp.gt.s32.totalorder 0, %v626
    %v628 = vsel %vm627, 0, %v626
    %v629 = vsub.s32 32, %v628
    %v630 = vshll.u32 %v621, %v628
    %v631 = vshrl.u32 %v613, %v629
    %v632 = vor.u32 %v630, %v631
    %v633 = vsub.s32 4294967266, %v628
    %v634 = vadd.s32 %v633, 127
    %v635 = vshll.u32 %v634, 23
    %v636 = vor.u32 4788187, %v635
    %v637 = vand.u32 2147483647, %v636
    %v639 = vcvt.s32.f32 %v632
    %v640 = vmul.f32 %v639, %v637
    %v641 = vxor.u32 %v640, 2147483648
    %v642 = vsel %vm559, %v641, %v640
    %v643 = vsub.s32 4, %v619
    %v644 = vsel %vm559, %v643, %v619
    %v645 = vsel %vm558, %v450, %v642
    %v646 = vsel %vm558, 0, %v644
    %v647 = vcosq.f32.pop %v645
    %v648 = vsinq.f32.pop %v645
    %vm649 = vweird.f32 %v450
    %v650 = vand.u32 %v646, 3
    %vm651 = vcmp.lt.s32.totalorder %v650, 2
    %vm652 = vcmp.eq.s32.totalorder %v650, 0
    %v653 = vxor.u32 %v648, 2147483648
    %v654 = vsel %vm652, %v647, %v653
    %vm655 = vcmp.eq.s32.totalorder %v650, 2
    %v656 = vxor.u32 %v647, 2147483648
    %v657 = vsel %vm655, %v656, %v648
    %v658 = vsel %vm651, %v654, %v657
    %v659 = vsel %vm649, nan, %v658
    %s660 = scalar_lea.vmem [#allocation5], 24
    %661 = vst.msk [vmem:[%s660] sm:$0xf] %vm25, %v659
    %v662 = vmul.f32 %v21, 8.0
    %v663 = vand.u32 2147483647, %v662
    %vm664 = vcmp.le.f32.partialorder %v663, 0.7853982
    %vm665 = vcmp.lt.s32.totalorder %v662, 0
    %v666 = vand.u32 %v662, 2139095040
    %v667 = vshrl.u32 %v666, 23
    %v668 = vsub.s32 %v667, 127
    %v669 = vand.u32 2147483647, %v662
    %v670 = vand.u32 %v669, 8388607
    %v671 = vor.u32 %v670, 8388608
    %v672 = vsub.s32 0, %v671
    %v673 = vadd.s32 %v668, 1
    %vm674 = vcmp.gt.s32.totalorder %v673, 0
    %v675 = vsel %vm674, %v673, 0
    %v676 = vshrl.u32 %v675, 5
    %v677 = vand.u32 %v675, 31
    %v678 = vsub.s32 32, %v677
    %v679 = vshrl.u32 683565275, %v678
    %v680 = vshll.u32 683565275, %v677
    %v681 = vshrl.u32 2475754826, %v678
    %v682 = vor.u32 %v680, %v681
    %v683 = vshll.u32 2475754826, %v677
    %v684 = vshrl.u32 2131351028, %v678
    %v685 = vor.u32 %v683, %v684
    %v686 = vshll.u32 2131351028, %v677
    %v687 = vshrl.u32 2102212464, %v678
    %v688 = vor.u32 %v686, %v687
    %v689 = vshll.u32 2102212464, %v677
    %v690 = vshrl.u32 920167782, %v678
    %v691 = vor.u32 %v689, %v690
    %v692 = vshll.u32 920167782, %v677
    %v693 = vshrl.u32 1326507024, %v678
    %v694 = vor.u32 %v692, %v693
    %vm695 = vcmp.lt.s32.totalorder %v676, 1
    %vm696 = vcmp.lt.s32.totalorder %v676, 2
    %vm697 = vcmp.lt.s32.totalorder %v676, 3
    %vm698 = vcmp.lt.s32.totalorder %v676, 4
    %v699 = vsel %vm695, %v679, %v682
    %v700 = vsel %vm698, %v688, 2102212464
    %v701 = vsel %vm697, %v685, %v700
    %v702 = vsel %vm696, %v699, %v701
    %v703 = vsel %vm695, %v682, %v685
    %v704 = vsel %vm698, %v691, 920167782
    %v705 = vsel %vm697, %v688, %v704
    %v706 = vsel %vm696, %v703, %v705
    %v707 = vsel %vm695, %v685, %v688
    %v708 = vsel %vm698, %v694, 1326507024
    %v709 = vsel %vm697, %v691, %v708
    %v710 = vsel %vm696, %v707, %v709
    %v711 = vshll.u32 %v671, 8
    %v712 = vmul.u32.u64.compose %v711, %v710
    %v713 = vextract.low.u32 %v712
    %v714 = vextract.high.u32 %v712
    %v715 = vmul.u32.u64.compose %v711, %v706
    %v716 = vextract.low.u32 %v715
    %v717 = vextract.high.u32 %v715
    %v718 = vmul.u32 %v711, %v702
    %v719 = vadd.s32 %v714, %v716
    %vm720 = vc.u32 %v714, %v716
    %v721 = vadd.s32 %v717, 1
    %v722 = vsel %vm720, %v721, %v717
    %v723 = vadd.s32 %v718, %v722
    %v724 = vadd.s32 %v723, 536870912
    %v725 = vshrl.u32 %v724, 30
    %v726 = vshll.u32 %v725, 30
    %v727 = vsub.s32 %v723, %v726
    %vm728 = vcmp.lt.s32.totalorder %v727, 0
    %v729 = vsub.s32 0, %v727
    %v730 = vsel %vm728, %v729, %v727
    %v731 = vclz %v730
    %v732 = vsub.s32 %v731, 2
    %vm733 = vcmp.gt.s32.totalorder 0, %v732
    %v734 = vsel %vm733, 0, %v732
    %v735 = vsub.s32 32, %v734
    %v736 = vshll.u32 %v727, %v734
    %v737 = vshrl.u32 %v719, %v735
    %v738 = vor.u32 %v736, %v737
    %v739 = vsub.s32 4294967266, %v734
    %v740 = vadd.s32 %v739, 127
    %v741 = vshll.u32 %v740, 23
    %v742 = vor.u32 4788187, %v741
    %v743 = vand.u32 2147483647, %v742
    %v745 = vcvt.s32.f32 %v738
    %v746 = vmul.f32 %v745, %v743
    %v747 = vxor.u32 %v746, 2147483648
    %v748 = vsel %vm665, %v747, %v746
    %v749 = vsub.s32 4, %v725
    %v750 = vsel %vm665, %v749, %v725
    %v751 = vsel %vm664, %v662, %v748
    %v752 = vsel %vm664, 0, %v750
    %v753 = vcosq.f32.pop %v751
    %v754 = vsinq.f32.pop %v751
    %vm755 = vweird.f32 %v662
    %v756 = vadd.s32 %v752, 3
    %v757 = vand.u32 %v756, 3
    %vm758 = vcmp.lt.s32.totalorder %v757, 2
    %vm759 = vcmp.eq.s32.totalorder %v757, 0
    %v760 = vxor.u32 %v754, 2147483648
    %v761 = vsel %vm759, %v753, %v760
    %vm762 = vcmp.eq.s32.totalorder %v757, 2
    %v763 = vxor.u32 %v753, 2147483648
    %v764 = vsel %vm762, %v763, %v754
    %v765 = vsel %vm758, %v761, %v764
    %v766 = vsel %vm755, nan, %v765
    %s767 = scalar_lea.vmem [#allocation5], 28
    %768 = vst.msk [vmem:[%s767] sm:$0xf] %vm25, %v766
    %v769 = vand.u32 2147483647, %v662
    %vm770 = vcmp.le.f32.partialorder %v769, 0.7853982
    %vm771 = vcmp.lt.s32.totalorder %v662, 0
    %v772 = vand.u32 %v662, 2139095040
    %v773 = vshrl.u32 %v772, 23
    %v774 = vsub.s32 %v773, 127
    %v775 = vand.u32 2147483647, %v662
    %v776 = vand.u32 %v775, 8388607
    %v777 = vor.u32 %v776, 8388608
    %v778 = vsub.s32 0, %v777
    %v779 = vadd.s32 %v774, 1
    %vm780 = vcmp.gt.s32.totalorder %v779, 0
    %v781 = vsel %vm780, %v779, 0
    %v782 = vshrl.u32 %v781, 5
    %v783 = vand.u32 %v781, 31
    %v784 = vsub.s32 32, %v783
    %v785 = vshrl.u32 683565275, %v784
    %v786 = vshll.u32 683565275, %v783
    %v787 = vshrl.u32 2475754826, %v784
    %v788 = vor.u32 %v786, %v787
    %v789 = vshll.u32 2475754826, %v783
    %v790 = vshrl.u32 2131351028, %v784
    %v791 = vor.u32 %v789, %v790
    %v792 = vshll.u32 2131351028, %v783
    %v793 = vshrl.u32 2102212464, %v784
    %v794 = vor.u32 %v792, %v793
    %v795 = vshll.u32 2102212464, %v783
    %v796 = vshrl.u32 920167782, %v784
    %v797 = vor.u32 %v795, %v796
    %v798 = vshll.u32 920167782, %v783
    %v799 = vshrl.u32 1326507024, %v784
    %v800 = vor.u32 %v798, %v799
    %vm801 = vcmp.lt.s32.totalorder %v782, 1
    %vm802 = vcmp.lt.s32.totalorder %v782, 2
    %vm803 = vcmp.lt.s32.totalorder %v782, 3
    %vm804 = vcmp.lt.s32.totalorder %v782, 4
    %v805 = vsel %vm801, %v785, %v788
    %v806 = vsel %vm804, %v794, 2102212464
    %v807 = vsel %vm803, %v791, %v806
    %v808 = vsel %vm802, %v805, %v807
    %v809 = vsel %vm801, %v788, %v791
    %v810 = vsel %vm804, %v797, 920167782
    %v811 = vsel %vm803, %v794, %v810
    %v812 = vsel %vm802, %v809, %v811
    %v813 = vsel %vm801, %v791, %v794
    %v814 = vsel %vm804, %v800, 1326507024
    %v815 = vsel %vm803, %v797, %v814
    %v816 = vsel %vm802, %v813, %v815
    %v817 = vshll.u32 %v777, 8
    %v818 = vmul.u32.u64.compose %v817, %v816
    %v819 = vextract.low.u32 %v818
    %v820 = vextract.high.u32 %v818
    %v821 = vmul.u32.u64.compose %v817, %v812
    %v822 = vextract.low.u32 %v821
    %v823 = vextract.high.u32 %v821
    %v824 = vmul.u32 %v817, %v808
    %v825 = vadd.s32 %v820, %v822
    %vm826 = vc.u32 %v820, %v822
    %v827 = vadd.s32 %v823, 1
    %v828 = vsel %vm826, %v827, %v823
    %v829 = vadd.s32 %v824, %v828
    %v830 = vadd.s32 %v829, 536870912
    %v831 = vshrl.u32 %v830, 30
    %v832 = vshll.u32 %v831, 30
    %v833 = vsub.s32 %v829, %v832
    %vm834 = vcmp.lt.s32.totalorder %v833, 0
    %v835 = vsub.s32 0, %v833
    %v836 = vsel %vm834, %v835, %v833
    %v837 = vclz %v836
    %v838 = vsub.s32 %v837, 2
    %vm839 = vcmp.gt.s32.totalorder 0, %v838
    %v840 = vsel %vm839, 0, %v838
    %v841 = vsub.s32 32, %v840
    %v842 = vshll.u32 %v833, %v840
    %v843 = vshrl.u32 %v825, %v841
    %v844 = vor.u32 %v842, %v843
    %v845 = vsub.s32 4294967266, %v840
    %v846 = vadd.s32 %v845, 127
    %v847 = vshll.u32 %v846, 23
    %v848 = vor.u32 4788187, %v847
    %v849 = vand.u32 2147483647, %v848
    %v851 = vcvt.s32.f32 %v844
    %v852 = vmul.f32 %v851, %v849
    %v853 = vxor.u32 %v852, 2147483648
    %v854 = vsel %vm771, %v853, %v852
    %v855 = vsub.s32 4, %v831
    %v856 = vsel %vm771, %v855, %v831
    %v857 = vsel %vm770, %v662, %v854
    %v858 = vsel %vm770, 0, %v856
    %v859 = vcosq.f32.pop %v857
    %v860 = vsinq.f32.pop %v857
    %vm861 = vweird.f32 %v662
    %v862 = vand.u32 %v858, 3
    %vm863 = vcmp.lt.s32.totalorder %v862, 2
    %vm864 = vcmp.eq.s32.totalorder %v862, 0
    %v865 = vxor.u32 %v860, 2147483648
    %v866 = vsel %vm864, %v859, %v865
    %vm867 = vcmp.eq.s32.totalorder %v862, 2
    %v868 = vxor.u32 %v859, 2147483648
    %v869 = vsel %vm867, %v868, %v860
    %v870 = vsel %vm863, %v866, %v869
    %v871 = vsel %vm861, nan, %v870
    %s872 = scalar_lea.vmem [#allocation5], 32
    %873 = vst.msk [vmem:[%s872] sm:$0xf] %vm25, %v871
    %v874 = vmul.f32 %v21, 16.0
    %v875 = vand.u32 2147483647, %v874
    %vm876 = vcmp.le.f32.partialorder %v875, 0.7853982
    %vm877 = vcmp.lt.s32.totalorder %v874, 0
    %v878 = vand.u32 %v874, 2139095040
    %v879 = vshrl.u32 %v878, 23
    %v880 = vsub.s32 %v879, 127
    %v881 = vand.u32 2147483647, %v874
    %v882 = vand.u32 %v881, 8388607
    %v883 = vor.u32 %v882, 8388608
    %v884 = vsub.s32 0, %v883
    %v885 = vadd.s32 %v880, 1
    %vm886 = vcmp.gt.s32.totalorder %v885, 0
    %v887 = vsel %vm886, %v885, 0
    %v888 = vshrl.u32 %v887, 5
    %v889 = vand.u32 %v887, 31
    %v890 = vsub.s32 32, %v889
    %v891 = vshrl.u32 683565275, %v890
    %v892 = vshll.u32 683565275, %v889
    %v893 = vshrl.u32 2475754826, %v890
    %v894 = vor.u32 %v892, %v893
    %v895 = vshll.u32 2475754826, %v889
    %v896 = vshrl.u32 2131351028, %v890
    %v897 = vor.u32 %v895, %v896
    %v898 = vshll.u32 2131351028, %v889
    %v899 = vshrl.u32 2102212464, %v890
    %v900 = vor.u32 %v898, %v899
    %v901 = vshll.u32 2102212464, %v889
    %v902 = vshrl.u32 920167782, %v890
    %v903 = vor.u32 %v901, %v902
    %v904 = vshll.u32 920167782, %v889
    %v905 = vshrl.u32 1326507024, %v890
    %v906 = vor.u32 %v904, %v905
    %vm907 = vcmp.lt.s32.totalorder %v888, 1
    %vm908 = vcmp.lt.s32.totalorder %v888, 2
    %vm909 = vcmp.lt.s32.totalorder %v888, 3
    %vm910 = vcmp.lt.s32.totalorder %v888, 4
    %v911 = vsel %vm907, %v891, %v894
    %v912 = vsel %vm910, %v900, 2102212464
    %v913 = vsel %vm909, %v897, %v912
    %v914 = vsel %vm908, %v911, %v913
    %v915 = vsel %vm907, %v894, %v897
    %v916 = vsel %vm910, %v903, 920167782
    %v917 = vsel %vm909, %v900, %v916
    %v918 = vsel %vm908, %v915, %v917
    %v919 = vsel %vm907, %v897, %v900
    %v920 = vsel %vm910, %v906, 1326507024
    %v921 = vsel %vm909, %v903, %v920
    %v922 = vsel %vm908, %v919, %v921
    %v923 = vshll.u32 %v883, 8
    %v924 = vmul.u32.u64.compose %v923, %v922
    %v925 = vextract.low.u32 %v924
    %v926 = vextract.high.u32 %v924
    %v927 = vmul.u32.u64.compose %v923, %v918
    %v928 = vextract.low.u32 %v927
    %v929 = vextract.high.u32 %v927
    %v930 = vmul.u32 %v923, %v914
    %v931 = vadd.s32 %v926, %v928
    %vm932 = vc.u32 %v926, %v928
    %v933 = vadd.s32 %v929, 1
    %v934 = vsel %vm932, %v933, %v929
    %v935 = vadd.s32 %v930, %v934
    %v936 = vadd.s32 %v935, 536870912
    %v937 = vshrl.u32 %v936, 30
    %v938 = vshll.u32 %v937, 30
    %v939 = vsub.s32 %v935, %v938
    %vm940 = vcmp.lt.s32.totalorder %v939, 0
    %v941 = vsub.s32 0, %v939
    %v942 = vsel %vm940, %v941, %v939
    %v943 = vclz %v942
    %v944 = vsub.s32 %v943, 2
    %vm945 = vcmp.gt.s32.totalorder 0, %v944
    %v946 = vsel %vm945, 0, %v944
    %v947 = vsub.s32 32, %v946
    %v948 = vshll.u32 %v939, %v946
    %v949 = vshrl.u32 %v931, %v947
    %v950 = vor.u32 %v948, %v949
    %v951 = vsub.s32 4294967266, %v946
    %v952 = vadd.s32 %v951, 127
    %v953 = vshll.u32 %v952, 23
    %v954 = vor.u32 4788187, %v953
    %v955 = vand.u32 2147483647, %v954
    %v957 = vcvt.s32.f32 %v950
    %v958 = vmul.f32 %v957, %v955
    %v959 = vxor.u32 %v958, 2147483648
    %v960 = vsel %vm877, %v959, %v958
    %v961 = vsub.s32 4, %v937
    %v962 = vsel %vm877, %v961, %v937
    %v963 = vsel %vm876, %v874, %v960
    %v964 = vsel %vm876, 0, %v962
    %v965 = vcosq.f32.pop %v963
    %v966 = vsinq.f32.pop %v963
    %vm967 = vweird.f32 %v874
    %v968 = vadd.s32 %v964, 3
    %v969 = vand.u32 %v968, 3
    %vm970 = vcmp.lt.s32.totalorder %v969, 2
    %vm971 = vcmp.eq.s32.totalorder %v969, 0
    %v972 = vxor.u32 %v966, 2147483648
    %v973 = vsel %vm971, %v965, %v972
    %vm974 = vcmp.eq.s32.totalorder %v969, 2
    %v975 = vxor.u32 %v965, 2147483648
    %v976 = vsel %vm974, %v975, %v966
    %v977 = vsel %vm970, %v973, %v976
    %v978 = vsel %vm967, nan, %v977
    %s979 = scalar_lea.vmem [#allocation5], 36
    %980 = vst.msk [vmem:[%s979] sm:$0xf] %vm25, %v978
    %v981 = vand.u32 2147483647, %v874
    %vm982 = vcmp.le.f32.partialorder %v981, 0.7853982
    %vm983 = vcmp.lt.s32.totalorder %v874, 0
    %v984 = vand.u32 %v874, 2139095040
    %v985 = vshrl.u32 %v984, 23
    %v986 = vsub.s32 %v985, 127
    %v987 = vand.u32 2147483647, %v874
    %v988 = vand.u32 %v987, 8388607
    %v989 = vor.u32 %v988, 8388608
    %v990 = vsub.s32 0, %v989
    %v991 = vadd.s32 %v986, 1
    %vm992 = vcmp.gt.s32.totalorder %v991, 0
    %v993 = vsel %vm992, %v991, 0
    %v994 = vshrl.u32 %v993, 5
    %v995 = vand.u32 %v993, 31
    %v996 = vsub.s32 32, %v995
    %v997 = vshrl.u32 683565275, %v996
    %v998 = vshll.u32 683565275, %v995
    %v999 = vshrl.u32 2475754826, %v996
    %v1000 = vor.u32 %v998, %v999
    %v1001 = vshll.u32 2475754826, %v995
    %v1002 = vshrl.u32 2131351028, %v996
    %v1003 = vor.u32 %v1001, %v1002
    %v1004 = vshll.u32 2131351028, %v995
    %v1005 = vshrl.u32 2102212464, %v996
    %v1006 = vor.u32 %v1004, %v1005
    %v1007 = vshll.u32 2102212464, %v995
    %v1008 = vshrl.u32 920167782, %v996
    %v1009 = vor.u32 %v1007, %v1008
    %v1010 = vshll.u32 920167782, %v995
    %v1011 = vshrl.u32 1326507024, %v996
    %v1012 = vor.u32 %v1010, %v1011
    %vm1013 = vcmp.lt.s32.totalorder %v994, 1
    %vm1014 = vcmp.lt.s32.totalorder %v994, 2
    %vm1015 = vcmp.lt.s32.totalorder %v994, 3
    %vm1016 = vcmp.lt.s32.totalorder %v994, 4
    %v1017 = vsel %vm1013, %v997, %v1000
    %v1018 = vsel %vm1016, %v1006, 2102212464
    %v1019 = vsel %vm1015, %v1003, %v1018
    %v1020 = vsel %vm1014, %v1017, %v1019
    %v1021 = vsel %vm1013, %v1000, %v1003
    %v1022 = vsel %vm1016, %v1009, 920167782
    %v1023 = vsel %vm1015, %v1006, %v1022
    %v1024 = vsel %vm1014, %v1021, %v1023
    %v1025 = vsel %vm1013, %v1003, %v1006
    %v1026 = vsel %vm1016, %v1012, 1326507024
    %v1027 = vsel %vm1015, %v1009, %v1026
    %v1028 = vsel %vm1014, %v1025, %v1027
    %v1029 = vshll.u32 %v989, 8
    %v1030 = vmul.u32.u64.compose %v1029, %v1028
    %v1031 = vextract.low.u32 %v1030
    %v1032 = vextract.high.u32 %v1030
    %v1033 = vmul.u32.u64.compose %v1029, %v1024
    %v1034 = vextract.low.u32 %v1033
    %v1035 = vextract.high.u32 %v1033
    %v1036 = vmul.u32 %v1029, %v1020
    %v1037 = vadd.s32 %v1032, %v1034
    %vm1038 = vc.u32 %v1032, %v1034
    %v1039 = vadd.s32 %v1035, 1
    %v1040 = vsel %vm1038, %v1039, %v1035
    %v1041 = vadd.s32 %v1036, %v1040
    %v1042 = vadd.s32 %v1041, 536870912
    %v1043 = vshrl.u32 %v1042, 30
    %v1044 = vshll.u32 %v1043, 30
    %v1045 = vsub.s32 %v1041, %v1044
    %vm1046 = vcmp.lt.s32.totalorder %v1045, 0
    %v1047 = vsub.s32 0, %v1045
    %v1048 = vsel %vm1046, %v1047, %v1045
    %v1049 = vclz %v1048
    %v1050 = vsub.s32 %v1049, 2
    %vm1051 = vcmp.gt.s32.totalorder 0, %v1050
    %v1052 = vsel %vm1051, 0, %v1050
    %v1053 = vsub.s32 32, %v1052
    %v1054 = vshll.u32 %v1045, %v1052
    %v1055 = vshrl.u32 %v1037, %v1053
    %v1056 = vor.u32 %v1054, %v1055
    %v1057 = vsub.s32 4294967266, %v1052
    %v1058 = vadd.s32 %v1057, 127
    %v1059 = vshll.u32 %v1058, 23
    %v1060 = vor.u32 4788187, %v1059
    %v1061 = vand.u32 2147483647, %v1060
    %v1063 = vcvt.s32.f32 %v1056
    %v1064 = vmul.f32 %v1063, %v1061
    %v1065 = vxor.u32 %v1064, 2147483648
    %v1066 = vsel %vm983, %v1065, %v1064
    %v1067 = vsub.s32 4, %v1043
    %v1068 = vsel %vm983, %v1067, %v1043
    %v1069 = vsel %vm982, %v874, %v1066
    %v1070 = vsel %vm982, 0, %v1068
    %v1071 = vcosq.f32.pop %v1069
    %v1072 = vsinq.f32.pop %v1069
    %vm1073 = vweird.f32 %v874
    %v1074 = vand.u32 %v1070, 3
    %vm1075 = vcmp.lt.s32.totalorder %v1074, 2
    %vm1076 = vcmp.eq.s32.totalorder %v1074, 0
    %v1077 = vxor.u32 %v1072, 2147483648
    %v1078 = vsel %vm1076, %v1071, %v1077
    %vm1079 = vcmp.eq.s32.totalorder %v1074, 2
    %v1080 = vxor.u32 %v1071, 2147483648
    %v1081 = vsel %vm1079, %v1080, %v1072
    %v1082 = vsel %vm1075, %v1078, %v1081
    %v1083 = vsel %vm1073, nan, %v1082
    %s1084 = scalar_lea.vmem [#allocation5], 40
    %1085 = vst.msk [vmem:[%s1084] sm:$0xf] %vm25, %v1083
    %v1086 = vmul.f32 %v21, 32.0
    %v1087 = vand.u32 2147483647, %v1086
    %vm1088 = vcmp.le.f32.partialorder %v1087, 0.7853982
    %vm1089 = vcmp.lt.s32.totalorder %v1086, 0
    %v1090 = vand.u32 %v1086, 2139095040
    %v1091 = vshrl.u32 %v1090, 23
    %v1092 = vsub.s32 %v1091, 127
    %v1093 = vand.u32 2147483647, %v1086
    %v1094 = vand.u32 %v1093, 8388607
    %v1095 = vor.u32 %v1094, 8388608
    %v1096 = vsub.s32 0, %v1095
    %v1097 = vadd.s32 %v1092, 1
    %vm1098 = vcmp.gt.s32.totalorder %v1097, 0
    %v1099 = vsel %vm1098, %v1097, 0
    %v1100 = vshrl.u32 %v1099, 5
    %v1101 = vand.u32 %v1099, 31
    %v1102 = vsub.s32 32, %v1101
    %v1103 = vshrl.u32 683565275, %v1102
    %v1104 = vshll.u32 683565275, %v1101
    %v1105 = vshrl.u32 2475754826, %v1102
    %v1106 = vor.u32 %v1104, %v1105
    %v1107 = vshll.u32 2475754826, %v1101
    %v1108 = vshrl.u32 2131351028, %v1102
    %v1109 = vor.u32 %v1107, %v1108
    %v1110 = vshll.u32 2131351028, %v1101
    %v1111 = vshrl.u32 2102212464, %v1102
    %v1112 = vor.u32 %v1110, %v1111
    %v1113 = vshll.u32 2102212464, %v1101
    %v1114 = vshrl.u32 920167782, %v1102
    %v1115 = vor.u32 %v1113, %v1114
    %v1116 = vshll.u32 920167782, %v1101
    %v1117 = vshrl.u32 1326507024, %v1102
    %v1118 = vor.u32 %v1116, %v1117
    %vm1119 = vcmp.lt.s32.totalorder %v1100, 1
    %vm1120 = vcmp.lt.s32.totalorder %v1100, 2
    %vm1121 = vcmp.lt.s32.totalorder %v1100, 3
    %vm1122 = vcmp.lt.s32.totalorder %v1100, 4
    %v1123 = vsel %vm1119, %v1103, %v1106
    %v1124 = vsel %vm1122, %v1112, 2102212464
    %v1125 = vsel %vm1121, %v1109, %v1124
    %v1126 = vsel %vm1120, %v1123, %v1125
    %v1127 = vsel %vm1119, %v1106, %v1109
    %v1128 = vsel %vm1122, %v1115, 920167782
    %v1129 = vsel %vm1121, %v1112, %v1128
    %v1130 = vsel %vm1120, %v1127, %v1129
    %v1131 = vsel %vm1119, %v1109, %v1112
    %v1132 = vsel %vm1122, %v1118, 1326507024
    %v1133 = vsel %vm1121, %v1115, %v1132
    %v1134 = vsel %vm1120, %v1131, %v1133
    %v1135 = vshll.u32 %v1095, 8
    %v1136 = vmul.u32.u64.compose %v1135, %v1134
    %v1137 = vextract.low.u32 %v1136
    %v1138 = vextract.high.u32 %v1136
    %v1139 = vmul.u32.u64.compose %v1135, %v1130
    %v1140 = vextract.low.u32 %v1139
    %v1141 = vextract.high.u32 %v1139
    %v1142 = vmul.u32 %v1135, %v1126
    %v1143 = vadd.s32 %v1138, %v1140
    %vm1144 = vc.u32 %v1138, %v1140
    %v1145 = vadd.s32 %v1141, 1
    %v1146 = vsel %vm1144, %v1145, %v1141
    %v1147 = vadd.s32 %v1142, %v1146
    %v1148 = vadd.s32 %v1147, 536870912
    %v1149 = vshrl.u32 %v1148, 30
    %v1150 = vshll.u32 %v1149, 30
    %v1151 = vsub.s32 %v1147, %v1150
    %vm1152 = vcmp.lt.s32.totalorder %v1151, 0
    %v1153 = vsub.s32 0, %v1151
    %v1154 = vsel %vm1152, %v1153, %v1151
    %v1155 = vclz %v1154
    %v1156 = vsub.s32 %v1155, 2
    %vm1157 = vcmp.gt.s32.totalorder 0, %v1156
    %v1158 = vsel %vm1157, 0, %v1156
    %v1159 = vsub.s32 32, %v1158
    %v1160 = vshll.u32 %v1151, %v1158
    %v1161 = vshrl.u32 %v1143, %v1159
    %v1162 = vor.u32 %v1160, %v1161
    %v1163 = vsub.s32 4294967266, %v1158
    %v1164 = vadd.s32 %v1163, 127
    %v1165 = vshll.u32 %v1164, 23
    %v1166 = vor.u32 4788187, %v1165
    %v1167 = vand.u32 2147483647, %v1166
    %v1169 = vcvt.s32.f32 %v1162
    %v1170 = vmul.f32 %v1169, %v1167
    %v1171 = vxor.u32 %v1170, 2147483648
    %v1172 = vsel %vm1089, %v1171, %v1170
    %v1173 = vsub.s32 4, %v1149
    %v1174 = vsel %vm1089, %v1173, %v1149
    %v1175 = vsel %vm1088, %v1086, %v1172
    %v1176 = vsel %vm1088, 0, %v1174
    %v1177 = vcosq.f32.pop %v1175
    %v1178 = vsinq.f32.pop %v1175
    %vm1179 = vweird.f32 %v1086
    %v1180 = vadd.s32 %v1176, 3
    %v1181 = vand.u32 %v1180, 3
    %vm1182 = vcmp.lt.s32.totalorder %v1181, 2
    %vm1183 = vcmp.eq.s32.totalorder %v1181, 0
    %v1184 = vxor.u32 %v1178, 2147483648
    %v1185 = vsel %vm1183, %v1177, %v1184
    %vm1186 = vcmp.eq.s32.totalorder %v1181, 2
    %v1187 = vxor.u32 %v1177, 2147483648
    %v1188 = vsel %vm1186, %v1187, %v1178
    %v1189 = vsel %vm1182, %v1185, %v1188
    %v1190 = vsel %vm1179, nan, %v1189
    %s1191 = scalar_lea.vmem [#allocation5], 44
    %1192 = vst.msk [vmem:[%s1191] sm:$0xf] %vm25, %v1190
    %v1193 = vand.u32 2147483647, %v1086
    %vm1194 = vcmp.le.f32.partialorder %v1193, 0.7853982
    %vm1195 = vcmp.lt.s32.totalorder %v1086, 0
    %v1196 = vand.u32 %v1086, 2139095040
    %v1197 = vshrl.u32 %v1196, 23
    %v1198 = vsub.s32 %v1197, 127
    %v1199 = vand.u32 2147483647, %v1086
    %v1200 = vand.u32 %v1199, 8388607
    %v1201 = vor.u32 %v1200, 8388608
    %v1202 = vsub.s32 0, %v1201
    %v1203 = vadd.s32 %v1198, 1
    %vm1204 = vcmp.gt.s32.totalorder %v1203, 0
    %v1205 = vsel %vm1204, %v1203, 0
    %v1206 = vshrl.u32 %v1205, 5
    %v1207 = vand.u32 %v1205, 31
    %v1208 = vsub.s32 32, %v1207
    %v1209 = vshrl.u32 683565275, %v1208
    %v1210 = vshll.u32 683565275, %v1207
    %v1211 = vshrl.u32 2475754826, %v1208
    %v1212 = vor.u32 %v1210, %v1211
    %v1213 = vshll.u32 2475754826, %v1207
    %v1214 = vshrl.u32 2131351028, %v1208
    %v1215 = vor.u32 %v1213, %v1214
    %v1216 = vshll.u32 2131351028, %v1207
    %v1217 = vshrl.u32 2102212464, %v1208
    %v1218 = vor.u32 %v1216, %v1217
    %v1219 = vshll.u32 2102212464, %v1207
    %v1220 = vshrl.u32 920167782, %v1208
    %v1221 = vor.u32 %v1219, %v1220
    %v1222 = vshll.u32 920167782, %v1207
    %v1223 = vshrl.u32 1326507024, %v1208
    %v1224 = vor.u32 %v1222, %v1223
    %vm1225 = vcmp.lt.s32.totalorder %v1206, 1
    %vm1226 = vcmp.lt.s32.totalorder %v1206, 2
    %vm1227 = vcmp.lt.s32.totalorder %v1206, 3
    %vm1228 = vcmp.lt.s32.totalorder %v1206, 4
    %v1229 = vsel %vm1225, %v1209, %v1212
    %v1230 = vsel %vm1228, %v1218, 2102212464
    %v1231 = vsel %vm1227, %v1215, %v1230
    %v1232 = vsel %vm1226, %v1229, %v1231
    %v1233 = vsel %vm1225, %v1212, %v1215
    %v1234 = vsel %vm1228, %v1221, 920167782
    %v1235 = vsel %vm1227, %v1218, %v1234
    %v1236 = vsel %vm1226, %v1233, %v1235
    %v1237 = vsel %vm1225, %v1215, %v1218
    %v1238 = vsel %vm1228, %v1224, 1326507024
    %v1239 = vsel %vm1227, %v1221, %v1238
    %v1240 = vsel %vm1226, %v1237, %v1239
    %v1241 = vshll.u32 %v1201, 8
    %v1242 = vmul.u32.u64.compose %v1241, %v1240
    %v1243 = vextract.low.u32 %v1242
    %v1244 = vextract.high.u32 %v1242
    %v1245 = vmul.u32.u64.compose %v1241, %v1236
    %v1246 = vextract.low.u32 %v1245
    %v1247 = vextract.high.u32 %v1245
    %v1248 = vmul.u32 %v1241, %v1232
    %v1249 = vadd.s32 %v1244, %v1246
    %vm1250 = vc.u32 %v1244, %v1246
    %v1251 = vadd.s32 %v1247, 1
    %v1252 = vsel %vm1250, %v1251, %v1247
    %v1253 = vadd.s32 %v1248, %v1252
    %v1254 = vadd.s32 %v1253, 536870912
    %v1255 = vshrl.u32 %v1254, 30
    %v1256 = vshll.u32 %v1255, 30
    %v1257 = vsub.s32 %v1253, %v1256
    %vm1258 = vcmp.lt.s32.totalorder %v1257, 0
    %v1259 = vsub.s32 0, %v1257
    %v1260 = vsel %vm1258, %v1259, %v1257
    %v1261 = vclz %v1260
    %v1262 = vsub.s32 %v1261, 2
    %vm1263 = vcmp.gt.s32.totalorder 0, %v1262
    %v1264 = vsel %vm1263, 0, %v1262
    %v1265 = vsub.s32 32, %v1264
    %v1266 = vshll.u32 %v1257, %v1264
    %v1267 = vshrl.u32 %v1249, %v1265
    %v1268 = vor.u32 %v1266, %v1267
    %v1269 = vsub.s32 4294967266, %v1264
    %v1270 = vadd.s32 %v1269, 127
    %v1271 = vshll.u32 %v1270, 23
    %v1272 = vor.u32 4788187, %v1271
    %v1273 = vand.u32 2147483647, %v1272
    %v1275 = vcvt.s32.f32 %v1268
    %v1276 = vmul.f32 %v1275, %v1273
    %v1277 = vxor.u32 %v1276, 2147483648
    %v1278 = vsel %vm1195, %v1277, %v1276
    %v1279 = vsub.s32 4, %v1255
    %v1280 = vsel %vm1195, %v1279, %v1255
    %v1281 = vsel %vm1194, %v1086, %v1278
    %v1282 = vsel %vm1194, 0, %v1280
    %v1283 = vcosq.f32.pop %v1281
    %v1284 = vsinq.f32.pop %v1281
    %vm1285 = vweird.f32 %v1086
    %v1286 = vand.u32 %v1282, 3
    %vm1287 = vcmp.lt.s32.totalorder %v1286, 2
    %vm1288 = vcmp.eq.s32.totalorder %v1286, 0
    %v1289 = vxor.u32 %v1284, 2147483648
    %v1290 = vsel %vm1288, %v1283, %v1289
    %vm1291 = vcmp.eq.s32.totalorder %v1286, 2
    %v1292 = vxor.u32 %v1283, 2147483648
    %v1293 = vsel %vm1291, %v1292, %v1284
    %v1294 = vsel %vm1287, %v1290, %v1293
    %v1295 = vsel %vm1285, nan, %v1294
    %s1296 = scalar_lea.vmem [#allocation5], 48
    %1297 = vst.msk [vmem:[%s1296] sm:$0xf] %vm25, %v1295
    // Predicated region
    $region10: #{tpu_custom_call.1} parent=1 // pred_check
      _
    $region11: #{tpu_custom_call.1} parent=1 // pred_check_branch
      %1299 = sbr.rel (0) target = $region13
    $region12: #{tpu_custom_call.1} parent=1 // pred_region
      %s1301 = ssub.s32 832, 832
      %1302 = vsyncadd [#allocation4], %s1301
      %s1303 = sshll.u32 [#allocation5], 4
      %s1304 = int_to_ptr.vmem [resolvable:$true] %s1303
      %1309 = dma.vmem_to_hbm [thread:$0]  %s1304, 832, %s1, [#allocation4], 64, 64, 4
    $region13: #{tpu_custom_call.1} parent=1 // pred_fallthru
      _
    // Predicated region
    $region14: #{tpu_custom_call.1} parent=1 // pred_check
      _
    $region15: #{tpu_custom_call.1} parent=1 // pred_check_branch
      %1311 = sbr.rel (0) target = $region17
    $region16: #{tpu_custom_call.1} parent=1 // pred_region
      %1312 = dma.done [#allocation4], 832
    $region17: #{tpu_custom_call.1} parent=1 // pred_fallthru
      _
    %1313 = vsyncpa [#allocation3], 1
    %1314 = vsyncpa [#allocation4], 1

</llo_original>
